<compile_context>
chip_gen: v5e
topology: v5e:2x2
jax: 0.10.0
libtpu: 0.0.40
codegen_flags: <defaults>
</compile_context>

<pallas_src>
import functools

import jax
import jax.numpy as jnp
from jax.experimental import pallas as pl
from jax.experimental.pallas import tpu as pltpu


def _round_up(x, m):
    return ((x + m - 1) // m) * m


def _cdiv(a, b):
    return -(-a // b)


def _ast_mlp_head_kernel(x_ref, w_ref, b_ref, o_ref, *, eps, hidden):
    # ---- LayerNorm statistics over the hidden (lane) axis, f32, one pass ----
    x = x_ref[...].astype(jnp.float32)                   # (TB, H)
    inv_h = jnp.float32(1.0 / hidden)
    s = jnp.sum(x, axis=-1, keepdims=True)               # (TB, 1)
    ss = jnp.sum(x * x, axis=-1, keepdims=True)          # (TB, 1)
    mean = s * inv_h
    # Clamp: single-pass variance can go slightly negative from cancellation.
    var = jnp.maximum(ss * inv_h - mean * mean, 0.0)
    inv = jax.lax.rsqrt(var + eps)                       # EUP rsqrt
    xn = (x - mean) * inv                                # gamma/beta folded into W/b

    # ---- Dense: bf16 MXU operands, f32 accumulation ----
    out = jnp.dot(xn.astype(jnp.bfloat16), w_ref[...],
                  preferred_element_type=jnp.float32)     # (TB, L_pad)
    o_ref[...] = (out + b_ref[...]).astype(o_ref.dtype)


def ast_mlp_head(hidden_state, ln_weight, ln_bias, dense_weight, dense_bias,
                 *, eps=1e-12, batch_tile=512):
    """Pallas implementation of ASTMLPHead.forward.

    hidden_state : (batch, hidden_size)
    ln_weight    : (hidden_size,)   LayerNorm gamma
    ln_bias      : (hidden_size,)   LayerNorm beta
    dense_weight : (num_labels, hidden_size)  -- PyTorch nn.Linear layout
    dense_bias   : (num_labels,)
    returns      : (batch, num_labels)
    """
    # TODO(synk): config.num_labels == 0 (nn.Identity dense) is not handled;
    # this wrapper assumes num_labels > 0 as in the classification setting.
    batch, hidden = hidden_state.shape
    num_labels = dense_weight.shape[0]

    # --- tile / padding geometry (minimal padding: <= 7 rows per tile) ---
    l_pad = _round_up(max(num_labels, 1), 128)          # lane-dense output
    n_tiles = _cdiv(batch, max(batch_tile, 1))
    tb = _round_up(_cdiv(batch, n_tiles), 8)            # sublane-aligned tile
    b_pad = n_tiles * tb
    grid = (n_tiles,)

    # --- wrapper-side glue (plain JAX): pad rows, fold LN affine into dense ---
    x = hidden_state
    if b_pad != batch:
        x = jnp.pad(x, ((0, b_pad - batch), (0, 0)))     # padded rows sliced off

    gamma = ln_weight.astype(jnp.float32)                # (H,)
    beta = ln_bias.astype(jnp.float32)                   # (H,)
    w_f32 = dense_weight.astype(jnp.float32).T           # (H, L)
    w_fold = gamma[:, None] * w_f32                      # fold gamma into W
    bias_fold = dense_bias.astype(jnp.float32) + beta @ w_f32   # fold beta into bias
    w_t = w_fold.astype(jnp.bfloat16)                    # (H, L) bf16 MXU operand
    bias = bias_fold.reshape(1, num_labels)
    if l_pad != num_labels:
        w_t = jnp.pad(w_t, ((0, 0), (0, l_pad - num_labels)))
        bias = jnp.pad(bias, ((0, 0), (0, l_pad - num_labels)))

    kernel = functools.partial(_ast_mlp_head_kernel, eps=float(eps),
                               hidden=hidden)

    x_item = jnp.dtype(hidden_state.dtype).itemsize
    out_item = x_item

    # --- VMEM budget derived from the actual tiles (double buffers + resident W
    #     + headroom for in-kernel f32 intermediates), capped for v7x's 64 MiB ---
    vmem_needed = (2 * tb * hidden * x_item              # x tiles (double-buffered)
                   + 2 * tb * l_pad * out_item           # out tiles (double-buffered)
                   + 2 * hidden * l_pad * 2              # bf16 W^T buffers
                   + 2 * l_pad * 4                       # bias
                   + 6 * tb * hidden * 4)                # f32 intermediates headroom
    vmem_limit = int(min(64 << 20, max(vmem_needed + (2 << 20), 16 << 20)))

    cost = pl.CostEstimate(
        flops=2 * b_pad * hidden * l_pad,
        transcendentals=b_pad,                            # one rsqrt per row
        bytes_accessed=(b_pad * hidden * x_item           # activations in
                        + hidden * l_pad * 2              # bf16 weights
                        + b_pad * l_pad * out_item),      # logits out
    )

    # Megacore sharding only pays off with >= 2 tiles (otherwise it just
    # duplicates the resident weight DMA per core).
    dim_sem = ("parallel",) if n_tiles >= 2 else ("arbitrary",)

    out = pl.pallas_call(
        kernel,
        out_shape=jax.ShapeDtypeStruct((b_pad, l_pad), hidden_state.dtype),
        grid_spec=pltpu.PrefetchScalarGridSpec(
            num_scalar_prefetch=0,
            grid=grid,
            in_specs=[
                pl.BlockSpec((tb, hidden), lambda i: (i, 0)),     # x tile
                pl.BlockSpec((hidden, l_pad), lambda i: (0, 0)),  # W' (resident)
                pl.BlockSpec((1, l_pad), lambda i: (0, 0)),       # bias' (resident)
            ],
            out_specs=pl.BlockSpec((tb, l_pad), lambda i: (i, 0)),
        ),
        compiler_params=pltpu.CompilerParams(
            dimension_semantics=dim_sem,
            vmem_limit_bytes=vmem_limit,
        ),
        cost_estimate=cost,
    )(x, w_t, bias)

    return out[:batch, :num_labels]


def _reference(hidden_state, ln_weight, ln_bias, dense_weight, dense_bias,
               eps=1e-12):
    x = hidden_state.astype(jnp.float32)
    mean = jnp.mean(x, axis=-1, keepdims=True)
    var = jnp.mean((x - mean) ** 2, axis=-1, keepdims=True)
    xn = (x - mean) / jnp.sqrt(var + eps)
    y = xn * ln_weight + ln_bias
    return y @ dense_weight.T + dense_bias


def _make_inputs(key, batch, hidden_size, num_labels):
    k_x, k_g, k_b, k_w, k_bias = jax.random.split(key, 5)
    hidden_state = jax.random.normal(k_x, (batch, hidden_size), dtype=jnp.float32)
    ln_weight = 1.0 + 0.02 * jax.random.normal(k_g, (hidden_size,), dtype=jnp.float32)
    ln_bias = 0.02 * jax.random.normal(k_b, (hidden_size,), dtype=jnp.float32)
    dense_weight = 0.05 * jax.random.normal(k_w, (num_labels, hidden_size),
                                            dtype=jnp.float32)
    dense_bias = 0.01 * jax.random.normal(k_bias, (num_labels,), dtype=jnp.float32)
    return hidden_state, ln_weight, ln_bias, dense_weight, dense_bias


if __name__ == "__main__":
    eps = 1e-12
    key = jax.random.PRNGKey(0)
    k1, k2 = jax.random.split(key)

    # Small shapes consistent with the module: pooled hidden state (B, H)
    # projected to num_labels logits.
    cases = [
        # (key, batch, hidden_size, num_labels, batch_tile)
        (k1, 2, 32, 8, 512),        # tiny smoke test, single (padded) tile
        (k2, 300, 256, 527, 128),   # multi-tile grid + minimal row padding +
                                    # label padding to a lane-dense 640
    ]
    for (kk, batch, hidden_size, num_labels, bt) in cases:
        args = _make_inputs(kk, batch, hidden_size, num_labels)
        out = ast_mlp_head(*args, eps=eps, batch_tile=bt)
        out = jax.block_until_ready(out)
        ref = _reference(*args, eps=eps)
        assert out.shape == (batch, num_labels), out.shape
        # bf16 MXU operands with f32 accumulation -> tolerance ~1e-2 level.
        assert jnp.allclose(out, ref, atol=2e-2, rtol=2e-2), (
            float(jnp.max(jnp.abs(out - ref))))

    print("KERNEL_OK")
</pallas_src>

<mosaic_0001>
module attributes {stable_mosaic.version = 11 : i64} {
  func.func @_ast_mlp_head_kernel(%arg0: i32, %arg1: memref<8x32xf32, #tpu.memory_space<vmem>>, %arg2: memref<32x128xbf16, #tpu.memory_space<vmem>>, %arg3: memref<1x128xf32, #tpu.memory_space<vmem>>, %arg4: memref<8x128xf32, #tpu.memory_space<vmem>>) attributes {dimension_semantics = [#tpu.dimension_semantics<arbitrary>], iteration_bounds = array<i64: 1>, scalar_prefetch = 0 : i64, scratch_operands = 0 : i64, tpu.core_type = #tpu.core_type<tc>, window_params = [{transform_indices = @transform_0, window_bounds = array<i64: 8, 32>}, {pipeline_mode = #tpu.pipeline_mode<synchronous>, transform_indices = @transform_1, window_bounds = array<i64: 32, 128>}, {pipeline_mode = #tpu.pipeline_mode<synchronous>, transform_indices = @transform_2, window_bounds = array<i64: 1, 128>}, {transform_indices = @transform_3, window_bounds = array<i64: 8, 128>}]} {
    %c0 = arith.constant 0 : index
    %c0_0 = arith.constant 0 : index
    %0 = vector.load %arg1[%c0, %c0_0] : memref<8x32xf32, #tpu.memory_space<vmem>>, vector<8x32xf32>
    %cst = arith.constant dense<0.000000e+00> : vector<8xf32>
    %1 = vector.multi_reduction <add>, %0, %cst [1] : vector<8x32xf32> to vector<8xf32>
    %2 = vector.shape_cast %1 : vector<8xf32> to vector<8x1xf32>
    %3 = arith.mulf %0, %0 : vector<8x32xf32>
    %cst_1 = arith.constant dense<0.000000e+00> : vector<8xf32>
    %4 = vector.multi_reduction <add>, %3, %cst_1 [1] : vector<8x32xf32> to vector<8xf32>
    %5 = vector.shape_cast %4 : vector<8xf32> to vector<8x1xf32>
    %cst_2 = arith.constant 3.125000e-02 : f32
    %6 = vector.broadcast %cst_2 : f32 to vector<8x1xf32>
    %7 = arith.mulf %2, %6 : vector<8x1xf32>
    %cst_3 = arith.constant 3.125000e-02 : f32
    %8 = vector.broadcast %cst_3 : f32 to vector<8x1xf32>
    %9 = arith.mulf %5, %8 : vector<8x1xf32>
    %10 = arith.mulf %7, %7 : vector<8x1xf32>
    %11 = arith.subf %9, %10 : vector<8x1xf32>
    %cst_4 = arith.constant 0.000000e+00 : f32
    %12 = vector.broadcast %cst_4 : f32 to vector<8x1xf32>
    %13 = arith.maximumf %11, %12 : vector<8x1xf32>
    %cst_5 = arith.constant 9.99999996E-13 : f32
    %14 = vector.broadcast %cst_5 : f32 to vector<8x1xf32>
    %15 = arith.addf %13, %14 : vector<8x1xf32>
    %16 = math.rsqrt %15 : vector<8x1xf32>
    %17 = vector.broadcast %7 : vector<8x1xf32> to vector<8x32xf32>
    %18 = arith.subf %0, %17 : vector<8x32xf32>
    %19 = vector.broadcast %16 : vector<8x1xf32> to vector<8x32xf32>
    %20 = arith.mulf %18, %19 : vector<8x32xf32>
    %21 = arith.truncf %20 : vector<8x32xf32> to vector<8x32xbf16>
    %c0_6 = arith.constant 0 : index
    %c0_7 = arith.constant 0 : index
    %22 = vector.load %arg2[%c0_6, %c0_7] : memref<32x128xbf16, #tpu.memory_space<vmem>>, vector<32x128xbf16>
    %cst_8 = arith.constant dense<0.000000e+00> : vector<8x128xf32>
    %23 = tpu.matmul %21, %22, %cst_8 {dimension_numbers = #tpu.dot_dimension_numbers<[1], [0], [0], [1], [0, 0, 1, 1], [], []>} : vector<8x32xbf16>, vector<32x128xbf16>, vector<8x128xf32> -> vector<8x128xf32>
    %c0_9 = arith.constant 0 : index
    %c0_10 = arith.constant 0 : index
    %24 = vector.load %arg3[%c0_9, %c0_10] : memref<1x128xf32, #tpu.memory_space<vmem>>, vector<1x128xf32>
    %25 = vector.broadcast %24 : vector<1x128xf32> to vector<8x128xf32>
    %26 = arith.addf %23, %25 : vector<8x128xf32>
    %c0_11 = arith.constant 0 : index
    %c0_12 = arith.constant 0 : index
    %27 = vector.load %arg4[%c0_11, %c0_12] : memref<8x128xf32, #tpu.memory_space<vmem>>, vector<8x128xf32>
    tpu.vector_store %arg4[%c0_11, %c0_12], %26 {strides = array<i32>} : memref<8x128xf32, #tpu.memory_space<vmem>>, vector<8x128xf32>,
    return
  }
  func.func @transform_0(%arg0: i32) -> (i32, i32) {
    %c0_i32 = arith.constant 0 : i32
    %c0_i32_0 = arith.constant 0 : i32
    return %arg0, %c0_i32 : i32, i32
  }
  func.func @transform_1(%arg0: i32) -> (i32, i32) {
    %c0_i32 = arith.constant 0 : i32
    %c0_i32_0 = arith.constant 0 : i32
    %c0_i32_1 = arith.constant 0 : i32
    return %c0_i32, %c0_i32_0 : i32, i32
  }
  func.func @transform_2(%arg0: i32) -> (i32, i32) {
    %c0_i32 = arith.constant 0 : i32
    %c0_i32_0 = arith.constant 0 : i32
    %c0_i32_1 = arith.constant 0 : i32
    return %c0_i32, %c0_i32_0 : i32, i32
  }
  func.func @transform_3(%arg0: i32) -> (i32, i32) {
    %c0_i32 = arith.constant 0 : i32
    %c0_i32_0 = arith.constant 0 : i32
    return %arg0, %c0_i32 : i32, i32
  }
}

</mosaic_0001>

<llo_original>
// kernel: tpu_custom_call.1
$region0: #{tpu_custom_call.1}
  #allocation0 [shape = 'u32[]', space=smem, size = 0x4, offset = 0x4, fixed_abs, tag = 'smem constant byte address 0x4 - core index']
  #allocation1 [shape = 'u32[72,128]{1,0:T(1,128)}', space=vmem, size = 0x9000, scoped, tag = 'internal scratch']
  %s0 = inlined_call_operand.hbm [shape: f32[8,32], index: 0, kind: input, shape index: {}]
  %s1 = inlined_call_operand.hbm [shape: bf16[32,128], index: 1, kind: input, shape index: {}]
  %s2 = inlined_call_operand.vmem [shape: f32[1,128], index: 2, kind: input, shape index: {}]
  %s3 = inlined_call_operand.hbm [shape: f32[8,128], index: 3, kind: output, shape index: {}]
  %s4 = sld [smem:[#allocation0]]
  $region30: #{tpu_custom_call.1} parent=0
    _
  %s6 = ssub.s32 1, %s4
  %s7 = scalar_select 0, %s6, %s4
  $region1: #{tpu_custom_call.1} parent=0
    #allocation2 [shape = 'u8[4096]{0}', space=vmem, size = 0x1000, scoped, tag = 'input window, operand 0, single buffered']
    #allocation3 [shape = 's32[1]{0}', space=sflag, size = 0x4, scoped, tag = 'scoped memory for tpu_custom_call.1']
    #allocation4 [shape = 's32[1]{0}', space=sflag, size = 0x4, scoped, tag = 'scoped memory for tpu_custom_call.1']
    #allocation5 [shape = 'u8[8192]{0}', space=vmem, size = 0x2000, scoped, tag = 'input window, operand 1, single buffered']
    #allocation6 [shape = 's32[1]{0}', space=sflag, size = 0x4, scoped, tag = 'scoped memory for tpu_custom_call.1']
    #allocation7 [shape = 'u8[4096]{0}', space=vmem, size = 0x1000, scoped, tag = 'output window, operand 0, single buffered']
    %8 = vsyncpa [#allocation3], 0
    %9 = vsyncpa [#allocation6], 0
    %10 = vsyncpa [#allocation4], 0
    // Predicated region
    $region2: #{tpu_custom_call.1} parent=1 // pred_check
      _
    $region3: #{tpu_custom_call.1} parent=1 // pred_check_branch
      %12 = sbr.rel (0) target = $region5
    $region4: #{tpu_custom_call.1} parent=1 // pred_region
      %14 = vsyncadd [#allocation3], 0
      %s16 = sshll.u32 %s0, 4
      %s17 = int_to_ptr.hbm [resolvable:$true] %s16
      %s18 = sshll.u32 [#allocation2], 4
      %s19 = int_to_ptr.vmem [resolvable:$true] %s18
      %21 = dma.hbm_to_vmem [thread:$0]  %s17, 128, %s19, [#allocation3]
    $region5: #{tpu_custom_call.1} parent=1 // pred_fallthru
      _
    // Predicated region
    $region6: #{tpu_custom_call.1} parent=1 // pred_check
      _
    $region7: #{tpu_custom_call.1} parent=1 // pred_check_branch
      %23 = sbr.rel (0) target = $region9
    $region8: #{tpu_custom_call.1} parent=1 // pred_region
      %25 = vsyncadd [#allocation6], 0
      %s26 = sshll.u32 %s1, 4
      %s27 = int_to_ptr.hbm [resolvable:$true] %s26
      %s28 = sshll.u32 [#allocation5], 4
      %s29 = int_to_ptr.vmem [resolvable:$true] %s28
      %34 = dma.hbm_to_vmem [thread:$0]  %s27, 256, %s29, [#allocation6], 64, 64, 4
    $region9: #{tpu_custom_call.1} parent=1 // pred_fallthru
      _
    // Predicated region
    $region10: #{tpu_custom_call.1} parent=1 // pred_check
      _
    $region11: #{tpu_custom_call.1} parent=1 // pred_check_branch
      %36 = sbr.rel (0) target = $region13
    $region12: #{tpu_custom_call.1} parent=1 // pred_region
      _
    $region13: #{tpu_custom_call.1} parent=1 // pred_fallthru
      _
    // Predicated region
    $region14: #{tpu_custom_call.1} parent=1 // pred_check
      _
    $region15: #{tpu_custom_call.1} parent=1 // pred_check_branch
      %38 = sbr.rel (0) target = $region17
    $region16: #{tpu_custom_call.1} parent=1 // pred_region
      %40 = dma.done [#allocation3], 128
    $region17: #{tpu_custom_call.1} parent=1 // pred_fallthru
      _
    // Predicated region
    $region18: #{tpu_custom_call.1} parent=1 // pred_check
      _
    $region19: #{tpu_custom_call.1} parent=1 // pred_check_branch
      %42 = sbr.rel (0) target = $region21
    $region20: #{tpu_custom_call.1} parent=1 // pred_region
      %44 = dma.done [#allocation6], 256
    $region21: #{tpu_custom_call.1} parent=1 // pred_fallthru
      _
    %v46 = vld [vmem:[#allocation2] sm:$0xff]
    %vm47 = vcmask 261120
    %v48 = vsel %vm47, %v46, 0.0
    %49 = vadd.xlane.f32.xlu0 %v48
    %v50 = vpop.xlane.xlu0 %49
    %v51 = vmul.f32 %v46, %v46
    %v52 = vsel %vm47, %v51, 0.0
    %53 = vadd.xlane.f32.xlu0 %v52
    %v54 = vpop.xlane.xlu0 %53
    %v55 = vmul.f32 %v50, 0.03125
    %v56 = vmul.f32 %v54, 0.03125
    %v57 = vmul.f32 %v55, %v55
    %v58 = vsub.f32 %v56, %v57
    %v59 = vmax.f32 %v58, 0.0
    %v60 = vadd.f32 %v59, 1e-12
    %v61 = vrsqrt.pop %v60
    %v62 = vmul.f32 %v61, %v60
    %v63 = vmul.f32 %v62, %v61
    %v64 = vmul.f32 0.5, %v63
    %v65 = vsub.f32 1.5, %v64
    %v66 = vmul.f32 %v61, %v65
    %vm67 = vweird.f32 %v60
    %vm68 = vweird.f32 %v61
    %vm69 = vmor %vm67, %vm68
    %v70 = vsel %vm69, %v61, %v66
    %v71 = vsub.f32 %v46, %v55
    %v72 = vmul.f32 %v71, %v70
    %v73 = vpack.c.bf16 %v72, %v72
    %v74 = vld [vmem:[#allocation5] sm:$0xf]
    %v75 = vld [vmem:[#allocation5 + $0x4] sm:$0xf]
    %v76 = vld [vmem:[#allocation5 + $0x8] sm:$0xf]
    %v77 = vld [vmem:[#allocation5 + $0xc] sm:$0xf]
    %v78 = vld [vmem:[%s2] sm:$0x1]
    %v80 = vperm.slane %v78, 0
    %v86 = vunpack.c.l.b16 %v74
    %v87 = vunpack.c.l.b16 %v75
    %v88 = vunpack.c.l.b16 %v76
    %v89 = vunpack.c.l.b16 %v77
    %v90 = vpack.c.b16 %v87, %v86
    %v91 = vpack.c.b16 %v89, %v88
    %v95 = vsel %vm47, %v73, 0
    %97 = vmatpush.bf16.msra.mxu0 0
    %98 = vmatpush.bf16.msra.mxu0 0
    %99 = vmatpush.bf16.msra.mxu0 0
    %100 = vmatpush.bf16.msra.mxu0 0
    %101 = vmatpush.bf16.msra.mxu0 0
    %102 = vmatpush.bf16.msra.mxu0 0
    %103 = vmatpush.bf16.msra.mxu0 %v91
    %104 = vmatpush.bf16.msra.mxu0 %v90
    %105 = vmatmul.bf16.gmra.mxu0 %v95
    %v106 = vpop.f32.mrf.mxu0
    %v107 = vadd.f32 %v80, %v106
    %v108 = vpop.f32.mrf.mxu0
    %109 = vdwg.mxu0
    %110 = vst [vmem:[#allocation7] sm:$0xff] %v107
    // Predicated region
    $region22: #{tpu_custom_call.1} parent=1 // pred_check
      _
    $region23: #{tpu_custom_call.1} parent=1 // pred_check_branch
      %112 = sbr.rel (0) target = $region25
    $region24: #{tpu_custom_call.1} parent=1 // pred_region
      %114 = vsyncadd [#allocation4], 0
      %s116 = sshll.u32 [#allocation7], 4
      %s117 = int_to_ptr.vmem [resolvable:$true] %s116
      %s118 = sshll.u32 %s3, 4
      %s119 = int_to_ptr.hbm [resolvable:$true] %s118
      %121 = dma.vmem_to_hbm [thread:$0]  %s117, 128, %s119, [#allocation4]
    $region25: #{tpu_custom_call.1} parent=1 // pred_fallthru
      _
    // Predicated region
    $region26: #{tpu_custom_call.1} parent=1 // pred_check
      _
    $region27: #{tpu_custom_call.1} parent=1 // pred_check_branch
      %123 = sbr.rel (0) target = $region29
    $region28: #{tpu_custom_call.1} parent=1 // pred_region
      %125 = dma.done [#allocation4], 128
    $region29: #{tpu_custom_call.1} parent=1 // pred_fallthru
      _
    %126 = vsyncpa [#allocation3], 1
    %127 = vsyncpa [#allocation6], 1
    %128 = vsyncpa [#allocation4], 1

</llo_original>
